<compile_context>
chip_gen: v7x
topology: tpu7x:2x2x1
jax: 0.10.0
libtpu: 0.0.40
codegen_flags: <defaults>
</compile_context>

<pallas_src>
import jax
import jax.numpy as jnp
from jax.experimental import pallas as pl
from jax.experimental.pallas import tpu as pltpu

_LANE = 128
# Keeps double-buffering alive and gives v7x's two TensorCores >= 2 steps each
# on the parallel grid axis.
_MIN_GRID_STEPS = 4
# Below this output lane width, add a third input buffer (DMA-issue latency is
# a larger fraction of each small step).
_NARROW_OUT_LANES = 512


def _chip_config():
    """Returns (vmem_budget_bytes, vmem_limit_bytes_or_None, small_output_bytes)."""
    mib = 1 << 20
    kind = ""
    try:
        kind = jax.devices()[0].device_kind.lower()
    except Exception:
        pass
    if "v7" in kind or "tpu7" in kind:
        # v7x: 64 MiB VMEM per TensorCore (32 MiB scoped default), ~3.2 TB/s
        # HBM per TC -> small copies finish under launch cost, so raise the
        # XLA-fallback threshold; keep the per-step footprint <= ~24 MiB.
        return 24 * mib, 32 * mib, 4 * mib
    if "v6" in kind:
        # v6e: 128 MiB physical VMEM, 32 MiB scoped default.
        return 64 * mib, 96 * mib, 2 * mib
    if "v5" in kind or "v4" in kind:
        # v5e/v5p/v4: 128 MiB physical VMEM, 16 MiB scoped default.
        return 48 * mib, 64 * mib, 1 * mib
    # Unknown generation: conservative, fits every scoped-VMEM default.
    return 12 * mib, None, 1 * mib


def _sublane_multiple(dtype) -> int:
    # Sub-32-bit dtypes pack rows along sublanes: 8 (f32) / 16 (bf16) / 32 (i8).
    return max(8, 32 // jnp.dtype(dtype).itemsize)


def _concat_kernel(e1_ref, e2_ref, out_ref):
    """Concatenate two (TB, D*) VMEM tiles along the feature (lane) axis."""
    d1 = e1_ref.shape[1]
    d2 = e2_ref.shape[1]
    # Static slices of the output Ref -> zero-cost views, plain vector stores.
    # With D1 % 128 == 0 (enforced by the wrapper's Pallas gate) the second
    # store starts at a lane-aligned column offset -> unmasked vst.
    out_ref[:, 0:d1] = e1_ref[...]
    out_ref[:, d1:d1 + d2] = e2_ref[...]


def _pick_batch_tile(batch: int, out_dim: int, dtype_bytes: int,
                     sub: int, vmem_budget: int, buf_factor: int) -> int:
    """Batch tile: fits the VMEM budget, gives >= _MIN_GRID_STEPS grid steps,
    is a sublane multiple, and (if possible) divides the batch evenly."""
    if batch <= sub:
        return batch            # full-extent block dim is always legal
    # Per-step buffered footprint ~= buf_factor * tb * out_dim * dtype_bytes.
    cap_vmem = vmem_budget // max(1, buf_factor * out_dim * dtype_bytes)
    # Never collapse to a single grid step: pipelining + dual-TC sharding.
    cap_steps = pl.cdiv(batch, _MIN_GRID_STEPS)
    tb = min(cap_vmem, cap_steps, batch)
    tb = max(sub, (tb // sub) * sub)
    # Prefer a tb that divides batch (no ragged / masked tail block), searching
    # downward a limited distance in sublane steps.
    if batch % tb != 0:
        cand = tb
        lo = max(sub, tb // 2)
        while cand >= lo:
            if batch % cand == 0:
                return cand
            cand -= sub
    return tb


def fusion_forward(embed1: jax.Array, embed2: jax.Array, *,
                   tile_b: int | None = None,
                   force_pallas: bool = False) -> jax.Array:
    """Pallas equivalent of Fusion.forward: concat along dim=1.

    embed1: (B, D1), embed2: (B, D2) -> (B, D1 + D2)
    """
    assert embed1.ndim == 2 and embed2.ndim == 2
    assert embed1.shape[0] == embed2.shape[0], "batch dims must match"
    assert embed1.dtype == embed2.dtype
    B, D1 = embed1.shape
    _, D2 = embed2.shape
    out_dim = D1 + D2
    dtype = embed1.dtype
    dtype_bytes = jnp.dtype(dtype).itemsize

    vmem_budget, vmem_limit, small_bytes = _chip_config()

    small = B * out_dim * dtype_bytes < small_bytes
    # Non-128-multiple feature dims would force masked partial stores; XLA's
    # native concat is at least as good for a pure copy, so fall back.
    misaligned = (D1 % _LANE != 0) or (D2 % _LANE != 0)
    if (small or misaligned) and not force_pallas:
        return jnp.concatenate([embed1, embed2], axis=1)

    sub = _sublane_multiple(dtype)
    narrow = out_dim <= _NARROW_OUT_LANES
    # 3x input buffers + 2x output when narrow, else 2x everything.
    buf_factor = 6 if narrow else 4

    if tile_b is not None:
        tb = min(tile_b, B)
        if tb != B and tb % sub != 0:
            tb = max(sub, (tb // sub) * sub)
    else:
        tb = _pick_batch_tile(B, out_dim, dtype_bytes, sub, vmem_budget,
                              buf_factor)

    grid = (pl.cdiv(B, tb),)
    out_spec = pl.BlockSpec((tb, out_dim), lambda i: (i, 0))

    cp_kwargs = dict(dimension_semantics=("parallel",))
    if vmem_limit is not None:
        cp_kwargs["vmem_limit_bytes"] = vmem_limit

    def _call(in_specs):
        return pl.pallas_call(
            _concat_kernel,
            out_shape=jax.ShapeDtypeStruct((B, out_dim), dtype),
            grid=grid,
            in_specs=in_specs,
            out_specs=out_spec,
            compiler_params=pltpu.CompilerParams(**cp_kwargs),
        )(embed1, embed2)

    plain_specs = [pl.BlockSpec((tb, D1), lambda i: (i, 0)),
                   pl.BlockSpec((tb, D2), lambda i: (i, 0))]
    if narrow:
        try:
            buffered_specs = [
                pl.BlockSpec((tb, D1), lambda i: (i, 0),
                             pipeline_mode=pl.Buffered(3)),
                pl.BlockSpec((tb, D2), lambda i: (i, 0),
                             pipeline_mode=pl.Buffered(3)),
            ]
            return _call(buffered_specs)
        except Exception:
            pass  # fall through to default double-buffered specs
    return _call(plain_specs)


def make_fusion_params(input_dim_1: int, input_dim_2: int, output_dim: int,
                       fusion_type: str = "concat", seed: int = 0):
    """Deterministic parameter init mirroring Fusion.__init__ shapes.

    NOTE: the PyTorch forward() never applies these parameters; they exist
    only for shape fidelity with the module definition.
    """
    fusion_type = fusion_type.lower()
    key = jax.random.PRNGKey(seed)
    params = {}
    if fusion_type == "concat":
        fusion_input_dim = input_dim_1 + input_dim_2
    elif fusion_type in ("sum", "mean"):
        assert input_dim_1 == input_dim_2
        fusion_input_dim = input_dim_1
    elif fusion_type == "mlp":
        fusion_input_dim = input_dim_1 + input_dim_2
        k1, k2, key = jax.random.split(key, 3)
        params["mlp_w1"] = jax.random.normal(
            k1, (fusion_input_dim, fusion_input_dim), jnp.float32) * 0.02
        params["mlp_b1"] = jnp.zeros((fusion_input_dim,), jnp.float32)
        params["mlp_w2"] = jax.random.normal(
            k2, (fusion_input_dim, fusion_input_dim), jnp.float32) * 0.02
        params["mlp_b2"] = jnp.zeros((fusion_input_dim,), jnp.float32)
    else:
        raise ValueError(f"Unsupported fusion type: {fusion_type}")

    if fusion_input_dim != output_dim:
        kp, key = jax.random.split(key)
        params["proj_w"] = jax.random.normal(
            kp, (fusion_input_dim, output_dim), jnp.float32) * 0.02
        params["proj_b"] = jnp.zeros((output_dim,), jnp.float32)
    return params


if __name__ == "__main__":
    key = jax.random.PRNGKey(0)
    ks = jax.random.split(key, 8)

    # --- Small shapes consistent with the module: embed1 (B, D1), embed2 (B, D2).
    B, D1, D2 = 2, 128, 128
    e1 = jax.random.normal(ks[0], (B, D1), dtype=jnp.float32)
    e2 = jax.random.normal(ks[1], (B, D2), dtype=jnp.float32)
    _ = make_fusion_params(D1, D2, D1 + D2, fusion_type="concat")
    out = jax.block_until_ready(fusion_forward(e1, e2, force_pallas=True))
    ref = jnp.concatenate([e1, e2], axis=1)
    assert out.shape == (B, D1 + D2) and out.dtype == e1.dtype
    assert bool(jnp.array_equal(out, ref)), "mismatch (small case)"

    # --- Batch-tiled path: auto picker -> >=4 grid steps, double-buffered.
    f1 = jax.random.normal(ks[2], (2048, 128), dtype=jnp.float32)
    f2 = jax.random.normal(ks[3], (2048, 128), dtype=jnp.float32)
    out2 = jax.block_until_ready(fusion_forward(f1, f2, force_pallas=True))
    assert bool(jnp.array_equal(out2, jnp.concatenate([f1, f2], axis=1))), \
        "mismatch (tiled case)"

    # --- Ragged tail: B not a multiple of the tile (nor of the sublane).
    g1 = jax.random.normal(ks[4], (300, 128), dtype=jnp.float32)
    g2 = jax.random.normal(ks[5], (300, 128), dtype=jnp.float32)
    out3 = jax.block_until_ready(
        fusion_forward(g1, g2, tile_b=128, force_pallas=True))
    assert bool(jnp.array_equal(out3, jnp.concatenate([g1, g2], axis=1))), \
        "mismatch (ragged case)"

    # --- bf16: exercises the dtype-native sublane multiple (16).
    h1 = jax.random.normal(ks[6], (512, 128), jnp.float32).astype(jnp.bfloat16)
    h2 = jax.random.normal(ks[7], (512, 128), jnp.float32).astype(jnp.bfloat16)
    out4 = jax.block_until_ready(fusion_forward(h1, h2, force_pallas=True))
    assert bool(jnp.array_equal(out4, jnp.concatenate([h1, h2], axis=1))), \
        "mismatch (bf16 case)"

    print("KERNEL_OK")
</pallas_src>

<mosaic_0001>
module attributes {stable_mosaic.version = 11 : i64} {
  func.func @_concat_kernel(%arg0: i32, %arg1: memref<2x128xf32, #tpu.memory_space<vmem>>, %arg2: memref<2x128xf32, #tpu.memory_space<vmem>>, %arg3: memref<2x256xf32, #tpu.memory_space<vmem>>) attributes {dimension_semantics = [#tpu.dimension_semantics<parallel>], iteration_bounds = array<i64: 1>, scalar_prefetch = 0 : i64, scratch_operands = 0 : i64, tpu.core_type = #tpu.core_type<tc>, window_params = [{transform_indices = @transform_0, window_bounds = array<i64: 2, 128>}, {transform_indices = @transform_1, window_bounds = array<i64: 2, 128>}, {transform_indices = @transform_2, window_bounds = array<i64: 2, 256>}]} {
    %c0 = arith.constant 0 : index
    %c0_0 = arith.constant 0 : index
    %0 = vector.load %arg1[%c0, %c0_0] : memref<2x128xf32, #tpu.memory_space<vmem>>, vector<2x128xf32>
    %c0_1 = arith.constant 0 : index
    %c0_2 = arith.constant 0 : index
    %1 = vector.load %arg3[%c0_1, %c0_2] : memref<2x256xf32, #tpu.memory_space<vmem>>, vector<2x128xf32>
    tpu.vector_store %arg3[%c0_1, %c0_2], %0 {strides = array<i32>} : memref<2x256xf32, #tpu.memory_space<vmem>>, vector<2x128xf32>,
    %c0_3 = arith.constant 0 : index
    %c0_4 = arith.constant 0 : index
    %2 = vector.load %arg2[%c0_3, %c0_4] : memref<2x128xf32, #tpu.memory_space<vmem>>, vector<2x128xf32>
    %c0_5 = arith.constant 0 : index
    %c128 = arith.constant 128 : index
    %3 = vector.load %arg3[%c0_5, %c128] : memref<2x256xf32, #tpu.memory_space<vmem>>, vector<2x128xf32>
    tpu.vector_store %arg3[%c0_5, %c128], %2 {strides = array<i32>} : memref<2x256xf32, #tpu.memory_space<vmem>>, vector<2x128xf32>,
    return
  }
  func.func @transform_0(%arg0: i32) -> (i32, i32) {
    %c0_i32 = arith.constant 0 : i32
    %c0_i32_0 = arith.constant 0 : i32
    return %arg0, %c0_i32 : i32, i32
  }
  func.func @transform_1(%arg0: i32) -> (i32, i32) {
    %c0_i32 = arith.constant 0 : i32
    %c0_i32_0 = arith.constant 0 : i32
    return %arg0, %c0_i32 : i32, i32
  }
  func.func @transform_2(%arg0: i32) -> (i32, i32) {
    %c0_i32 = arith.constant 0 : i32
    %c0_i32_0 = arith.constant 0 : i32
    return %arg0, %c0_i32 : i32, i32
  }
}

</mosaic_0001>

<llo_original>
// kernel: tpu_custom_call.1
$region0: #{tpu_custom_call.1}
  #allocation0 [shape = 'u32[]', space=smem, size = 0x4, offset = 0x4, fixed_abs, tag = 'smem constant byte address 0x4 - core index']
  #allocation1 [shape = 'u32[144,128]{1,0:T(1,128)}', space=vmem, size = 0x12000, scoped, tag = 'internal scratch']
  %s0 = inlined_call_operand.hbm [shape: f32[2,128], index: 0, kind: input, shape index: {}]
  %s1 = inlined_call_operand.vmem [shape: f32[2,128], index: 1, kind: input, shape index: {}]
  %s2 = inlined_call_operand.hbm [shape: f32[2,256], index: 2, kind: output, shape index: {}]
  %s3 = sld [smem:[#allocation0]]
  $region22: #{tpu_custom_call.1} parent=0
    _
  %s5 = ssub.s32 1, %s3
  %s6 = scalar_select 0, %s5, %s3
  $region1: #{tpu_custom_call.1} parent=0
    #allocation2 [shape = 'u8[1024]{0}', space=vmem, size = 0x400, scoped, tag = 'input window, operand 0, single buffered']
    #allocation3 [shape = 's32[1]{0}', space=sflag, size = 0x4, scoped, tag = 'scoped memory for tpu_custom_call.1']
    #allocation4 [shape = 's32[1]{0}', space=sflag, size = 0x4, scoped, tag = 'scoped memory for tpu_custom_call.1']
    #allocation5 [shape = 'u8[2048]{0}', space=vmem, size = 0x800, scoped, tag = 'output window, operand 0, single buffered']
    %7 = vsyncpa [#allocation3], 0
    %8 = vsyncpa [#allocation4], 0
    // Predicated region
    $region2: #{tpu_custom_call.1} parent=1 // pred_check
      _
    $region3: #{tpu_custom_call.1} parent=1 // pred_check_branch
      %10 = sbr.rel (0) target = $region5
    $region4: #{tpu_custom_call.1} parent=1 // pred_region
      %s12 = ssub.s32 32, 32
      %13 = vsyncadd [#allocation3], %s12
      %s15 = sshll.u32 [#allocation2], 4
      %s16 = int_to_ptr.vmem [resolvable:$true] %s15
      %18 = dma.hbm_to_vmem [thread:$0]  %s0, 32, %s16, [#allocation3]
    $region5: #{tpu_custom_call.1} parent=1 // pred_fallthru
      _
    // Predicated region
    $region6: #{tpu_custom_call.1} parent=1 // pred_check
      _
    $region7: #{tpu_custom_call.1} parent=1 // pred_check_branch
      %20 = sbr.rel (0) target = $region9
    $region8: #{tpu_custom_call.1} parent=1 // pred_region
      _
    $region9: #{tpu_custom_call.1} parent=1 // pred_fallthru
      _
    // Predicated region
    $region10: #{tpu_custom_call.1} parent=1 // pred_check
      _
    $region11: #{tpu_custom_call.1} parent=1 // pred_check_branch
      %22 = sbr.rel (0) target = $region13
    $region12: #{tpu_custom_call.1} parent=1 // pred_region
      %23 = dma.done [#allocation3], 32
    $region13: #{tpu_custom_call.1} parent=1 // pred_fallthru
      _
    %v24 = vld [vmem:[#allocation2] sm:$0x3]
    %25 = vst [vmem:[#allocation5] sm:$0x3] %v24
    %v26 = vld [vmem:[%s1] sm:$0x3]
    %27 = vst [vmem:[#allocation5 + $0x2] sm:$0x3] %v26
    // Predicated region
    $region14: #{tpu_custom_call.1} parent=1 // pred_check
      _
    $region15: #{tpu_custom_call.1} parent=1 // pred_check_branch
      %29 = sbr.rel (0) target = $region17
    $region16: #{tpu_custom_call.1} parent=1 // pred_region
      %s31 = ssub.s32 64, 64
      %32 = vsyncadd [#allocation4], %s31
      %s34 = sshll.u32 [#allocation5], 4
      %s35 = int_to_ptr.vmem [resolvable:$true] %s34
      %37 = dma.vmem_to_hbm [thread:$0]  %s35, 64, %s2, [#allocation4]
    $region17: #{tpu_custom_call.1} parent=1 // pred_fallthru
      _
    // Predicated region
    $region18: #{tpu_custom_call.1} parent=1 // pred_check
      _
    $region19: #{tpu_custom_call.1} parent=1 // pred_check_branch
      %39 = sbr.rel (0) target = $region21
    $region20: #{tpu_custom_call.1} parent=1 // pred_region
      %40 = dma.done [#allocation4], 64
    $region21: #{tpu_custom_call.1} parent=1 // pred_fallthru
      _
    %41 = vsyncpa [#allocation3], 1
    %42 = vsyncpa [#allocation4], 1

</llo_original>
